<compile_context>
chip_gen: v7x
topology: tpu7x:2x2x1
jax: 0.10.0
libtpu: 0.0.40
codegen_flags: <defaults>
</compile_context>

<pallas_src>
import jax
import jax.numpy as jnp
from jax.experimental import pallas as pl
from jax.experimental.pallas import tpu as pltpu

LANES = 128                       # vreg lane width; last dim of the lane-dense slab
SUBLANES = 8                      # sublane granularity for f32 tiles
MAX_TILE_ROWS = 8192              # 8192x128 f32 = 4 MiB/block; 4 buffers = 16 MiB < 32 MiB limit
MIN_SPLIT_BYTES = 2 * 1024 * 1024 # above this, force >= 2 grid steps (v7x 2-TC sharding)


def conv1x1_kernel(w_ref, b_ref, x_ref, o_ref):
    # w_ref / b_ref: (1,) float32 scalars in SMEM (kept f32 even for low-precision x:
    # v5e has no native bf16 VPU and f32 scalars broadcast cleanly).
    # x_ref / o_ref: (tile_rows, LANES) tiles in VMEM.
    # Conv2d(1,1,1) == per-element scale + bias; "- False" is a value no-op (dropped).
    y = x_ref[...].astype(jnp.float32) * w_ref[0] + b_ref[0]
    o_ref[...] = y.astype(o_ref.dtype)


def _pick_tiling(rows, itemsize):
    total_bytes = rows * LANES * itemsize
    if rows <= MAX_TILE_ROWS:
        if total_bytes >= MIN_SPLIT_BYTES and rows > SUBLANES:
            # Split into >= 2 blocks so the "parallel" grid axis lets v7x's two
            # TensorCores stream concurrently (harmless on single-TC v5e/v6e:
            # two pipelined steps of a bandwidth-bound stream).
            half = (rows + 1) // 2
            tile_rows = ((half + SUBLANES - 1) // SUBLANES) * SUBLANES
        else:
            tile_rows = rows          # single full-array block; zero per-step overhead
    else:
        tile_rows = MAX_TILE_ROWS     # 4 MiB blocks: DMA time >> 0.35 us step overhead
    grid_rows = pl.cdiv(rows, tile_rows)
    return tile_rows, grid_rows


def model_forward(x, weight, bias, *, donate_x=False, small_fallback_bytes=0):
    """Forward of the torch Model.

    x: (N, 1, H, W); weight: (1, 1, 1, 1); bias: (1,).
    donate_x: alias x's HBM buffer to the output (same shape/dtype elementwise op).
    small_fallback_bytes: if total bytes < this, emit the affine in plain XLA
      instead of paying pallas_call launch overhead (recommend ~1 MiB in prod).
      Default 0 so this demo always exercises the Pallas kernel.
    """
    N, C, H, W = x.shape
    assert C == 1
    total = N * C * H * W
    itemsize = jnp.dtype(x.dtype).itemsize

    if total * itemsize < small_fallback_bytes:
        # Tiny input: a standalone kernel launch costs more than the op itself.
        y = x.astype(jnp.float32) * weight.reshape(()) + bias.reshape(())
        return y.astype(x.dtype).reshape(N, C, H, W)

    # Lane-dense slab: pad the flat array to a multiple of 128 so every store is
    # an unmasked full-width vst (no masked vst.msk partial stores).
    pad = (-total) % LANES
    x_flat = x.reshape(total)
    if pad:
        x_flat = jnp.pad(x_flat, (0, pad))
    rows = (total + pad) // LANES
    x2d = x_flat.reshape(rows, LANES)

    # Parameters live as float32 SMEM scalars; cast happens only at the store.
    w_s = weight.reshape(1).astype(jnp.float32)
    b_s = bias.reshape(1).astype(jnp.float32)

    tile_rows, grid_rows = _pick_tiling(rows, itemsize)

    out2d = pl.pallas_call(
        conv1x1_kernel,
        out_shape=jax.ShapeDtypeStruct((rows, LANES), x.dtype),
        grid=(grid_rows,),
        in_specs=[
            pl.BlockSpec(memory_space=pltpu.SMEM),                     # weight scalar
            pl.BlockSpec(memory_space=pltpu.SMEM),                     # bias scalar
            pl.BlockSpec((tile_rows, LANES), lambda i: (i, 0)),        # input tile
        ],
        out_specs=pl.BlockSpec((tile_rows, LANES), lambda i: (i, 0)),  # output tile
        compiler_params=pltpu.CompilerParams(
            dimension_semantics=("parallel",),   # megacore / 2-TC sharding when grid > 1
            vmem_limit_bytes=32 * 1024 * 1024,   # explicit budget; safe on v5e/v6e/v7x
        ),
        input_output_aliases=({2: 0} if donate_x else {}),
    )(w_s, b_s, x2d)

    out_flat = out2d.reshape(rows * LANES)
    if pad:
        out_flat = out_flat[:total]
    return out_flat.reshape(N, C, H, W)


if __name__ == "__main__":
    key = jax.random.PRNGKey(0)
    k1, k2 = jax.random.split(key)

    # Deterministic synthetic Conv2d(1, 1, 1) parameters.
    weight = jnp.full((1, 1, 1, 1), 0.5, dtype=jnp.float32)
    bias = jnp.full((1,), 0.25, dtype=jnp.float32)

    def ref_fn(x):
        # Reference (pure JAX): 1x1 conv == x * w + b; "- False" is a value no-op.
        return x * weight[0, 0, 0, 0] + bias[0]

    # 1) Module's shape: 192*182 = 34944 = 273*128 -> lane-dense path, grid of 1.
    x_a = jax.random.normal(k1, (1, 1, 192, 182), dtype=jnp.float32)
    out_a = jax.block_until_ready(model_forward(x_a, weight, bias))
    assert out_a.shape == (1, 1, 192, 182)
    assert jnp.allclose(out_a, ref_fn(x_a), atol=1e-6, rtol=1e-6)

    # 2) Element count NOT a multiple of 128 (2*96*91 = 17472) -> pad-to-128 path.
    x_b = jax.random.normal(k2, (2, 1, 96, 91), dtype=jnp.float32)
    out_b = jax.block_until_ready(model_forward(x_b, weight, bias))
    assert out_b.shape == (2, 1, 96, 91)
    assert jnp.allclose(out_b, ref_fn(x_b), atol=1e-6, rtol=1e-6)

    print("KERNEL_OK")
</pallas_src>

<mosaic_0001>
module attributes {stable_mosaic.version = 11 : i64} {
  func.func @conv1x1_kernel(%arg0: i32, %arg1: memref<1xf32, #tpu.memory_space<smem>>, %arg2: memref<1xf32, #tpu.memory_space<smem>>, %arg3: memref<273x128xf32, #tpu.memory_space<vmem>>, %arg4: memref<273x128xf32, #tpu.memory_space<vmem>>) attributes {dimension_semantics = [#tpu.dimension_semantics<parallel>], iteration_bounds = array<i64: 1>, scalar_prefetch = 0 : i64, scratch_operands = 0 : i64, tpu.core_type = #tpu.core_type<tc>, window_params = [{transform_indices = @transform_0, window_bounds = array<i64: 1>}, {transform_indices = @transform_1, window_bounds = array<i64: 1>}, {transform_indices = @transform_2, window_bounds = array<i64: 273, 128>}, {transform_indices = @transform_3, window_bounds = array<i64: 273, 128>}]} {
    %c0 = arith.constant 0 : index
    %c0_0 = arith.constant 0 : index
    %0 = vector.load %arg3[%c0, %c0_0] : memref<273x128xf32, #tpu.memory_space<vmem>>, vector<273x128xf32>
    %c0_1 = arith.constant 0 : index
    %1 = memref.load %arg1[%c0_1] : memref<1xf32, #tpu.memory_space<smem>>
    %2 = vector.broadcast %1 : f32 to vector<273x128xf32>
    %3 = arith.mulf %0, %2 : vector<273x128xf32>
    %c0_2 = arith.constant 0 : index
    %4 = memref.load %arg2[%c0_2] : memref<1xf32, #tpu.memory_space<smem>>
    %5 = vector.broadcast %4 : f32 to vector<273x128xf32>
    %6 = arith.addf %3, %5 : vector<273x128xf32>
    %c0_3 = arith.constant 0 : index
    %c0_4 = arith.constant 0 : index
    %7 = vector.load %arg4[%c0_3, %c0_4] : memref<273x128xf32, #tpu.memory_space<vmem>>, vector<273x128xf32>
    tpu.vector_store %arg4[%c0_3, %c0_4], %6 {strides = array<i32>} : memref<273x128xf32, #tpu.memory_space<vmem>>, vector<273x128xf32>,
    return
  }
  func.func @transform_0(%arg0: i32) -> i32 {
    %c0_i32 = arith.constant 0 : i32
    %c0_i32_0 = arith.constant 0 : i32
    return %c0_i32 : i32
  }
  func.func @transform_1(%arg0: i32) -> i32 {
    %c0_i32 = arith.constant 0 : i32
    %c0_i32_0 = arith.constant 0 : i32
    return %c0_i32 : i32
  }
  func.func @transform_2(%arg0: i32) -> (i32, i32) {
    %c0_i32 = arith.constant 0 : i32
    %c0_i32_0 = arith.constant 0 : i32
    return %arg0, %c0_i32 : i32, i32
  }
  func.func @transform_3(%arg0: i32) -> (i32, i32) {
    %c0_i32 = arith.constant 0 : i32
    %c0_i32_0 = arith.constant 0 : i32
    return %arg0, %c0_i32 : i32, i32
  }
}

</mosaic_0001>

<llo_original>
// kernel: tpu_custom_call.1
$region0: #{tpu_custom_call.1}
  #allocation0 [shape = 'u32[]', space=smem, size = 0x4, offset = 0x4, fixed_abs, tag = 'smem constant byte address 0x4 - core index']
  #allocation1 [shape = 'u32[144,128]{1,0:T(1,128)}', space=vmem, size = 0x12000, scoped, tag = 'internal scratch']
  #allocation2 [shape = 'f32[1]{0:T(128)S(6)}', space=smem, size = 0x200, scoped, tag = 'scoped memory for tpu_custom_call.1']
  #allocation3 [shape = 'f32[1]{0:T(128)S(6)}', space=smem, size = 0x200, scoped, tag = 'scoped memory for tpu_custom_call.1']
  %s0 = inlined_call_operand.<no memory space> [shape: f32[1], index: 0, kind: input, shape index: {}]
  %s1 = inlined_call_operand.<no memory space> [shape: f32[1], index: 1, kind: input, shape index: {}]
  %s2 = inlined_call_operand.hbm [shape: f32[273,128], index: 2, kind: input, shape index: {}]
  %s3 = inlined_call_operand.hbm [shape: f32[273,128], index: 3, kind: output, shape index: {}]
  %s4 = sld [smem:[#allocation0]]
  $region26: #{tpu_custom_call.1} parent=0
    _
  %s6 = ssub.s32 1, %s4
  %s7 = scalar_select 0, %s6, %s4
  %8 = sst [smem:[#allocation2]] %s0
  %9 = sst [smem:[#allocation3]] %s1
  $region1: #{tpu_custom_call.1} parent=0
    #allocation4 [shape = 'u8[143360]{0}', space=vmem, size = 0x23000, scoped, tag = 'input window, operand 2, single buffered']
    #allocation5 [shape = 's32[1]{0}', space=sflag, size = 0x4, scoped, tag = 'scoped memory for tpu_custom_call.1']
    #allocation6 [shape = 's32[1]{0}', space=sflag, size = 0x4, scoped, tag = 'scoped memory for tpu_custom_call.1']
    #allocation7 [shape = 'u8[143360]{0}', space=vmem, size = 0x23000, scoped, tag = 'output window, operand 0, single buffered']
    %10 = vsyncpa [#allocation5], 0
    %11 = vsyncpa [#allocation6], 0
    // Predicated region
    $region2: #{tpu_custom_call.1} parent=1 // pred_check
      _
    $region3: #{tpu_custom_call.1} parent=1 // pred_check_branch
      %13 = sbr.rel (0) target = $region5
    $region4: #{tpu_custom_call.1} parent=1 // pred_region
      _
    $region5: #{tpu_custom_call.1} parent=1 // pred_fallthru
      _
    // Predicated region
    $region6: #{tpu_custom_call.1} parent=1 // pred_check
      _
    $region7: #{tpu_custom_call.1} parent=1 // pred_check_branch
      %15 = sbr.rel (0) target = $region9
    $region8: #{tpu_custom_call.1} parent=1 // pred_region
      _
    $region9: #{tpu_custom_call.1} parent=1 // pred_fallthru
      _
    // Predicated region
    $region10: #{tpu_custom_call.1} parent=1 // pred_check
      _
    $region11: #{tpu_custom_call.1} parent=1 // pred_check_branch
      %17 = sbr.rel (0) target = $region13
    $region12: #{tpu_custom_call.1} parent=1 // pred_region
      %s19 = ssub.s32 4480, 4480
      %20 = vsyncadd [#allocation5], %s19
      %s21 = sshll.u32 [#allocation4], 4
      %s22 = int_to_ptr.vmem [resolvable:$true] %s21
      %27 = dma.hbm_to_vmem [thread:$0]  %s2, 4480, %s22, [#allocation5], 128, 128, 8
    $region13: #{tpu_custom_call.1} parent=1 // pred_fallthru
      _
    // Predicated region
    $region14: #{tpu_custom_call.1} parent=1 // pred_check
      _
    $region15: #{tpu_custom_call.1} parent=1 // pred_check_branch
      %29 = sbr.rel (0) target = $region17
    $region16: #{tpu_custom_call.1} parent=1 // pred_region
      %30 = dma.done [#allocation5], 4480
    $region17: #{tpu_custom_call.1} parent=1 // pred_fallthru
      _
    %v31 = vld [vmem:[#allocation4] sm:$0xff]
    %v32 = vld [vmem:[#allocation4 + $0x8] sm:$0xff]
    %v33 = vld [vmem:[#allocation4 + $0x10] sm:$0xff]
    %v34 = vld [vmem:[#allocation4 + $0x18] sm:$0xff]
    %v35 = vld [vmem:[#allocation4 + $0x20] sm:$0xff]
    %v36 = vld [vmem:[#allocation4 + $0x28] sm:$0xff]
    %v37 = vld [vmem:[#allocation4 + $0x30] sm:$0xff]
    %v38 = vld [vmem:[#allocation4 + $0x38] sm:$0xff]
    %v39 = vld [vmem:[#allocation4 + $0x40] sm:$0xff]
    %v40 = vld [vmem:[#allocation4 + $0x48] sm:$0xff]
    %v41 = vld [vmem:[#allocation4 + $0x50] sm:$0xff]
    %v42 = vld [vmem:[#allocation4 + $0x58] sm:$0xff]
    %v43 = vld [vmem:[#allocation4 + $0x60] sm:$0xff]
    %v44 = vld [vmem:[#allocation4 + $0x68] sm:$0xff]
    %v45 = vld [vmem:[#allocation4 + $0x70] sm:$0xff]
    %v46 = vld [vmem:[#allocation4 + $0x78] sm:$0xff]
    %v47 = vld [vmem:[#allocation4 + $0x80] sm:$0xff]
    %v48 = vld [vmem:[#allocation4 + $0x88] sm:$0xff]
    %v49 = vld [vmem:[#allocation4 + $0x90] sm:$0xff]
    %v50 = vld [vmem:[#allocation4 + $0x98] sm:$0xff]
    %v51 = vld [vmem:[#allocation4 + $0xa0] sm:$0xff]
    %v52 = vld [vmem:[#allocation4 + $0xa8] sm:$0xff]
    %v53 = vld [vmem:[#allocation4 + $0xb0] sm:$0xff]
    %v54 = vld [vmem:[#allocation4 + $0xb8] sm:$0xff]
    %v55 = vld [vmem:[#allocation4 + $0xc0] sm:$0xff]
    %v56 = vld [vmem:[#allocation4 + $0xc8] sm:$0xff]
    %v57 = vld [vmem:[#allocation4 + $0xd0] sm:$0xff]
    %v58 = vld [vmem:[#allocation4 + $0xd8] sm:$0xff]
    %v59 = vld [vmem:[#allocation4 + $0xe0] sm:$0xff]
    %v60 = vld [vmem:[#allocation4 + $0xe8] sm:$0xff]
    %v61 = vld [vmem:[#allocation4 + $0xf0] sm:$0xff]
    %v62 = vld [vmem:[#allocation4 + $0xf8] sm:$0xff]
    %v63 = vld [vmem:[#allocation4 + $0x100] sm:$0xff]
    %v64 = vld [vmem:[#allocation4 + $0x108] sm:$0xff]
    %v65 = vld [vmem:[#allocation4 + $0x110] sm:$0x1]
    %s66 = sld [smem:[#allocation2]]
    %v67 = vstv %s66
    %v68 = vmul.f32 %v31, %v67
    %v69 = vmul.f32 %v32, %v67
    %v70 = vmul.f32 %v33, %v67
    %v71 = vmul.f32 %v34, %v67
    %v72 = vmul.f32 %v35, %v67
    %v73 = vmul.f32 %v36, %v67
    %v74 = vmul.f32 %v37, %v67
    %v75 = vmul.f32 %v38, %v67
    %v76 = vmul.f32 %v39, %v67
    %v77 = vmul.f32 %v40, %v67
    %v78 = vmul.f32 %v41, %v67
    %v79 = vmul.f32 %v42, %v67
    %v80 = vmul.f32 %v43, %v67
    %v81 = vmul.f32 %v44, %v67
    %v82 = vmul.f32 %v45, %v67
    %v83 = vmul.f32 %v46, %v67
    %v84 = vmul.f32 %v47, %v67
    %v85 = vmul.f32 %v48, %v67
    %v86 = vmul.f32 %v49, %v67
    %v87 = vmul.f32 %v50, %v67
    %v88 = vmul.f32 %v51, %v67
    %v89 = vmul.f32 %v52, %v67
    %v90 = vmul.f32 %v53, %v67
    %v91 = vmul.f32 %v54, %v67
    %v92 = vmul.f32 %v55, %v67
    %v93 = vmul.f32 %v56, %v67
    %v94 = vmul.f32 %v57, %v67
    %v95 = vmul.f32 %v58, %v67
    %v96 = vmul.f32 %v59, %v67
    %v97 = vmul.f32 %v60, %v67
    %v98 = vmul.f32 %v61, %v67
    %v99 = vmul.f32 %v62, %v67
    %v100 = vmul.f32 %v63, %v67
    %v101 = vmul.f32 %v64, %v67
    %v102 = vmul.f32 %v65, %v67
    %s103 = sld [smem:[#allocation3]]
    %v104 = vstv %s103
    %v105 = vadd.f32 %v68, %v104
    %v106 = vadd.f32 %v69, %v104
    %v107 = vadd.f32 %v70, %v104
    %v108 = vadd.f32 %v71, %v104
    %v109 = vadd.f32 %v72, %v104
    %v110 = vadd.f32 %v73, %v104
    %v111 = vadd.f32 %v74, %v104
    %v112 = vadd.f32 %v75, %v104
    %v113 = vadd.f32 %v76, %v104
    %v114 = vadd.f32 %v77, %v104
    %v115 = vadd.f32 %v78, %v104
    %v116 = vadd.f32 %v79, %v104
    %v117 = vadd.f32 %v80, %v104
    %v118 = vadd.f32 %v81, %v104
    %v119 = vadd.f32 %v82, %v104
    %v120 = vadd.f32 %v83, %v104
    %v121 = vadd.f32 %v84, %v104
    %v122 = vadd.f32 %v85, %v104
    %v123 = vadd.f32 %v86, %v104
    %v124 = vadd.f32 %v87, %v104
    %v125 = vadd.f32 %v88, %v104
    %v126 = vadd.f32 %v89, %v104
    %v127 = vadd.f32 %v90, %v104
    %v128 = vadd.f32 %v91, %v104
    %v129 = vadd.f32 %v92, %v104
    %v130 = vadd.f32 %v93, %v104
    %v131 = vadd.f32 %v94, %v104
    %v132 = vadd.f32 %v95, %v104
    %v133 = vadd.f32 %v96, %v104
    %v134 = vadd.f32 %v97, %v104
    %v135 = vadd.f32 %v98, %v104
    %v136 = vadd.f32 %v99, %v104
    %v137 = vadd.f32 %v100, %v104
    %v138 = vadd.f32 %v101, %v104
    %v139 = vadd.f32 %v102, %v104
    %140 = vst [vmem:[#allocation7] sm:$0xff] %v105
    %141 = vst [vmem:[#allocation7 + $0x8] sm:$0xff] %v106
    %142 = vst [vmem:[#allocation7 + $0x10] sm:$0xff] %v107
    %143 = vst [vmem:[#allocation7 + $0x18] sm:$0xff] %v108
    %144 = vst [vmem:[#allocation7 + $0x20] sm:$0xff] %v109
    %145 = vst [vmem:[#allocation7 + $0x28] sm:$0xff] %v110
    %146 = vst [vmem:[#allocation7 + $0x30] sm:$0xff] %v111
    %147 = vst [vmem:[#allocation7 + $0x38] sm:$0xff] %v112
    %148 = vst [vmem:[#allocation7 + $0x40] sm:$0xff] %v113
    %149 = vst [vmem:[#allocation7 + $0x48] sm:$0xff] %v114
    %150 = vst [vmem:[#allocation7 + $0x50] sm:$0xff] %v115
    %151 = vst [vmem:[#allocation7 + $0x58] sm:$0xff] %v116
    %152 = vst [vmem:[#allocation7 + $0x60] sm:$0xff] %v117
    %153 = vst [vmem:[#allocation7 + $0x68] sm:$0xff] %v118
    %154 = vst [vmem:[#allocation7 + $0x70] sm:$0xff] %v119
    %155 = vst [vmem:[#allocation7 + $0x78] sm:$0xff] %v120
    %156 = vst [vmem:[#allocation7 + $0x80] sm:$0xff] %v121
    %157 = vst [vmem:[#allocation7 + $0x88] sm:$0xff] %v122
    %158 = vst [vmem:[#allocation7 + $0x90] sm:$0xff] %v123
    %159 = vst [vmem:[#allocation7 + $0x98] sm:$0xff] %v124
    %160 = vst [vmem:[#allocation7 + $0xa0] sm:$0xff] %v125
    %161 = vst [vmem:[#allocation7 + $0xa8] sm:$0xff] %v126
    %162 = vst [vmem:[#allocation7 + $0xb0] sm:$0xff] %v127
    %163 = vst [vmem:[#allocation7 + $0xb8] sm:$0xff] %v128
    %164 = vst [vmem:[#allocation7 + $0xc0] sm:$0xff] %v129
    %165 = vst [vmem:[#allocation7 + $0xc8] sm:$0xff] %v130
    %166 = vst [vmem:[#allocation7 + $0xd0] sm:$0xff] %v131
    %167 = vst [vmem:[#allocation7 + $0xd8] sm:$0xff] %v132
    %168 = vst [vmem:[#allocation7 + $0xe0] sm:$0xff] %v133
    %169 = vst [vmem:[#allocation7 + $0xe8] sm:$0xff] %v134
    %170 = vst [vmem:[#allocation7 + $0xf0] sm:$0xff] %v135
    %171 = vst [vmem:[#allocation7 + $0xf8] sm:$0xff] %v136
    %172 = vst [vmem:[#allocation7 + $0x100] sm:$0xff] %v137
    %173 = vst [vmem:[#allocation7 + $0x108] sm:$0xff] %v138
    %174 = vst [vmem:[#allocation7 + $0x110] sm:$0x1] %v139
    // Predicated region
    $region18: #{tpu_custom_call.1} parent=1 // pred_check
      _
    $region19: #{tpu_custom_call.1} parent=1 // pred_check_branch
      %176 = sbr.rel (0) target = $region21
    $region20: #{tpu_custom_call.1} parent=1 // pred_region
      %s178 = ssub.s32 4480, 4480
      %179 = vsyncadd [#allocation6], %s178
      %s180 = sshll.u32 [#allocation7], 4
      %s181 = int_to_ptr.vmem [resolvable:$true] %s180
      %186 = dma.vmem_to_hbm [thread:$0]  %s181, 4480, %s3, [#allocation6], 128, 128, 8
    $region21: #{tpu_custom_call.1} parent=1 // pred_fallthru
      _
    // Predicated region
    $region22: #{tpu_custom_call.1} parent=1 // pred_check
      _
    $region23: #{tpu_custom_call.1} parent=1 // pred_check_branch
      %188 = sbr.rel (0) target = $region25
    $region24: #{tpu_custom_call.1} parent=1 // pred_region
      %189 = dma.done [#allocation6], 4480
    $region25: #{tpu_custom_call.1} parent=1 // pred_fallthru
      _
    %190 = vsyncpa [#allocation5], 1
    %191 = vsyncpa [#allocation6], 1

</llo_original>
